<compile_context>
chip_gen: v7x
topology: tpu7x:2x2x1
jax: 0.10.0
libtpu: 0.0.40
codegen_flags: <defaults>
</compile_context>

<pallas_src>
import functools

import jax
import jax.numpy as jnp
from jax import lax
from jax.experimental import pallas as pl
from jax.experimental.pallas import tpu as pltpu

LN_EPS = 1e-5


def output_layer_kernel(x_ref, w1_ref, b1_ref, gamma_ref, wc_ref, bias_ref,
                        o_ref, *, C, N, G):
    GN = G * N
    x = x_ref[0]                                            # [C*T, G*N]

    # tconv1: contraction over (c_in, t) for all G batch slots at once.
    x1 = jnp.dot(w1_ref[...], x,
                 preferred_element_type=jnp.float32) + b1_ref[...]   # [C, GN]

    # Per-batch-slot LayerNorm stats, one pass (sum and sum of squares).
    # seg[g, l] == 1 iff lane l belongs to batch slot g (columns are g*N + n).
    col = lax.broadcasted_iota(jnp.int32, (G, GN), 1)
    row = lax.broadcasted_iota(jnp.int32, (G, GN), 0)
    seg = jnp.where((col >= row * N) & (col < (row + 1) * N), 1.0, 0.0)

    rowsum = jnp.sum(x1, axis=0, keepdims=True)             # [1, GN]
    rowsumsq = jnp.sum(x1 * x1, axis=0, keepdims=True)      # [1, GN]
    s1 = jnp.sum(seg * rowsum, axis=1, keepdims=True)       # [G, 1]
    s2 = jnp.sum(seg * rowsumsq, axis=1, keepdims=True)     # [G, 1]
    inv_cnt = 1.0 / (C * N)
    mean = s1 * inv_cnt
    var = jnp.maximum(s2 * inv_cnt - mean * mean, 0.0)
    inv_std = lax.rsqrt(var + LN_EPS)                       # [G, 1]

    # Broadcast per-slot stats back across their N lanes.
    mean_b = jnp.sum(mean * seg, axis=0, keepdims=True)     # [1, GN]
    inv_b = jnp.sum(inv_std * seg, axis=0, keepdims=True)   # [1, GN]

    # LN scale (beta folded into bias_ref) + fused tconv2/fc projection.
    x_ln = (x1 - mean_b) * inv_b * gamma_ref[...]           # [C, GN]
    y = jnp.dot(wc_ref[...], x_ln,
                preferred_element_type=jnp.float32) + bias_ref[...]  # [1, GN]
    o_ref[0] = y


def output_layer(x, params):
    """x: [B, C, T, N] float32  ->  [B, 1, 1, N] float32 (matches PyTorch)."""
    B, C, T, N = x.shape
    w1, b1, gamma, beta, w2, b2, wf, bf = params
    CT = C * T

    # Group G batch elements per grid step so the lane dim is >= 128.
    if N % 128 == 0:
        G = 1
    else:
        G = max(1, pl.cdiv(128, N))
    num_groups = pl.cdiv(B, G)
    B_pad = num_groups * G
    GN = G * N

    # Pack x as [num_groups, C*T, G*N]; padded batch slots are zero and are
    # sliced away after the call.
    x_pad = x if B_pad == B else jnp.pad(
        x, ((0, B_pad - B), (0, 0), (0, 0), (0, 0)))
    x_packed = (x_pad.reshape(num_groups, G, C, T, N)
                     .transpose(0, 2, 3, 1, 4)
                     .reshape(num_groups, CT, GN))

    # Trace-time weight glue: flatten tconv1, fuse fc into tconv2, fold the
    # LayerNorm beta into the fused bias row.
    w1_mat = w1.reshape(C, CT)                 # [C_out, C_in*T]
    b1_col = b1.reshape(C, 1)
    w2_mat = w2.reshape(C, C)
    wf_mat = wf.reshape(1, C)
    wc = wf_mat @ w2_mat                       # [1, C]   (fc o tconv2)
    bc = wf_mat @ b2.reshape(C, 1) + bf.reshape(1, 1)      # [1, 1]
    bias_row = jnp.tile(wc @ beta.T + bc, (1, G))          # [1, GN]
    gamma_tiled = jnp.tile(gamma.T, (1, G))                # [C, GN]

    kernel = functools.partial(output_layer_kernel, C=C, N=N, G=G)
    out = pl.pallas_call(
        kernel,
        out_shape=jax.ShapeDtypeStruct((num_groups, 1, GN), jnp.float32),
        grid=(num_groups,),
        in_specs=[
            pl.BlockSpec((1, CT, GN), lambda i: (i, 0, 0)),   # packed x
            pl.BlockSpec((C, CT), lambda i: (0, 0)),          # W1
            pl.BlockSpec((C, 1), lambda i: (0, 0)),           # b1
            pl.BlockSpec((C, GN), lambda i: (0, 0)),          # gamma (tiled)
            pl.BlockSpec((1, C), lambda i: (0, 0)),           # Wc = Wf@W2
            pl.BlockSpec((1, GN), lambda i: (0, 0)),          # fused bias row
        ],
        out_specs=pl.BlockSpec((1, 1, GN), lambda i: (i, 0, 0)),
        compiler_params=pltpu.CompilerParams(
            dimension_semantics=("parallel",)),
    )(x_packed, w1_mat, b1_col, gamma_tiled, wc, bias_row)

    return out.reshape(B_pad, N)[:B].reshape(B, 1, 1, N)


def reference(x, params):
    """Plain-JAX reference reproducing the PyTorch forward."""
    w1, b1, gamma, beta, w2, b2, wf, bf = params
    # tconv1: Conv2d(c, c, (T, 1)) with no padding -> [B, C, 1, N]
    x1 = jnp.einsum('bctn,oct->bon', x, w1[:, :, :, 0]) + b1[None, :, None]
    # LayerNorm([n, c]) on permuted [B, 1, N, C]
    x_p = jnp.transpose(x1, (0, 2, 1))             # [B, N, C]
    mean = jnp.mean(x_p, axis=(1, 2), keepdims=True)
    var = jnp.mean((x_p - mean) ** 2, axis=(1, 2), keepdims=True)
    x_ln = (x_p - mean) / jnp.sqrt(var + LN_EPS) * gamma[None] + beta[None]
    x_ln = jnp.transpose(x_ln, (0, 2, 1))          # [B, C, N]
    # tconv2 (1x1) and fc (1x1)
    x2 = jnp.einsum('oc,bcn->bon', w2[:, :, 0, 0], x_ln) + b2[None, :, None]
    y = jnp.einsum('oc,bcn->bon', wf[:, :, 0, 0], x2) + bf[None, :, None]
    return y[:, :, None, :]                        # [B, 1, 1, N]


def init_params(key, C, T, N):
    ks = jax.random.split(key, 8)
    scale = 0.1
    w1 = scale * jax.random.normal(ks[0], (C, C, T, 1), jnp.float32)
    b1 = scale * jax.random.normal(ks[1], (C,), jnp.float32)
    gamma = 1.0 + scale * jax.random.normal(ks[2], (N, C), jnp.float32)
    beta = scale * jax.random.normal(ks[3], (N, C), jnp.float32)
    w2 = scale * jax.random.normal(ks[4], (C, C, 1, 1), jnp.float32)
    b2 = scale * jax.random.normal(ks[5], (C,), jnp.float32)
    wf = scale * jax.random.normal(ks[6], (1, C, 1, 1), jnp.float32)
    bf = scale * jax.random.normal(ks[7], (1,), jnp.float32)
    return (w1, b1, gamma, beta, w2, b2, wf, bf)


if __name__ == "__main__":
    B, C, T, N = 2, 4, 8, 16
    key = jax.random.PRNGKey(0)
    k_x, k_p = jax.random.split(key)
    x = jax.random.normal(k_x, (B, C, T, N), jnp.float32)
    params = init_params(k_p, C, T, N)

    y = output_layer(x, params)
    jax.block_until_ready(y)

    y_ref = reference(x, params)
    assert y.shape == (B, 1, 1, N)
    assert jnp.allclose(y, y_ref, atol=1e-4, rtol=1e-4), "mismatch vs reference"
    print("KERNEL_OK")
</pallas_src>

<mosaic_0001>
module attributes {stable_mosaic.version = 11 : i64} {
  func.func @output_layer_kernel(%arg0: i32, %arg1: memref<1x32x128xf32, #tpu.memory_space<vmem>>, %arg2: memref<4x32xf32, #tpu.memory_space<vmem>>, %arg3: memref<4x1xf32, #tpu.memory_space<vmem>>, %arg4: memref<4x128xf32, #tpu.memory_space<vmem>>, %arg5: memref<1x4xf32, #tpu.memory_space<vmem>>, %arg6: memref<1x128xf32, #tpu.memory_space<vmem>>, %arg7: memref<1x1x128xf32, #tpu.memory_space<vmem>>) attributes {dimension_semantics = [#tpu.dimension_semantics<parallel>], iteration_bounds = array<i64: 1>, scalar_prefetch = 0 : i64, scratch_operands = 0 : i64, tpu.core_type = #tpu.core_type<tc>, window_params = [{transform_indices = @transform_0, window_bounds = array<i64: 1, 32, 128>}, {pipeline_mode = #tpu.pipeline_mode<synchronous>, transform_indices = @transform_1, window_bounds = array<i64: 4, 32>}, {pipeline_mode = #tpu.pipeline_mode<synchronous>, transform_indices = @transform_2, window_bounds = array<i64: 4, 1>}, {pipeline_mode = #tpu.pipeline_mode<synchronous>, transform_indices = @transform_3, window_bounds = array<i64: 4, 128>}, {pipeline_mode = #tpu.pipeline_mode<synchronous>, transform_indices = @transform_4, window_bounds = array<i64: 1, 4>}, {pipeline_mode = #tpu.pipeline_mode<synchronous>, transform_indices = @transform_5, window_bounds = array<i64: 1, 128>}, {transform_indices = @transform_6, window_bounds = array<i64: 1, 1, 128>}]} {
    %c0 = arith.constant 0 : index
    %c0_0 = arith.constant 0 : index
    %c0_1 = arith.constant 0 : index
    %0 = vector.load %arg1[%c0, %c0_0, %c0_1] : memref<1x32x128xf32, #tpu.memory_space<vmem>>, vector<1x32x128xf32>
    %1 = vector.shape_cast %0 : vector<1x32x128xf32> to vector<32x128xf32>
    %c0_2 = arith.constant 0 : index
    %c0_3 = arith.constant 0 : index
    %2 = vector.load %arg2[%c0_2, %c0_3] : memref<4x32xf32, #tpu.memory_space<vmem>>, vector<4x32xf32>
    %cst = arith.constant dense<0.000000e+00> : vector<4x128xf32>
    %3 = tpu.matmul %2, %1, %cst {dimension_numbers = #tpu.dot_dimension_numbers<[1], [0], [0], [1], [0, 0, 1, 1], [], []>} : vector<4x32xf32>, vector<32x128xf32>, vector<4x128xf32> -> vector<4x128xf32>
    %c0_4 = arith.constant 0 : index
    %c0_5 = arith.constant 0 : index
    %4 = vector.load %arg3[%c0_4, %c0_5] : memref<4x1xf32, #tpu.memory_space<vmem>>, vector<4x1xf32>
    %5 = vector.broadcast %4 : vector<4x1xf32> to vector<4x128xf32>
    %6 = arith.addf %3, %5 : vector<4x128xf32>
    %7 = tpu.iota {dimensions = array<i32: 1>} : vector<8x128xi32>
    %8 = tpu.iota {dimensions = array<i32: 0>} : vector<8x128xi32>
    %c16_i32 = arith.constant 16 : i32
    %9 = vector.broadcast %c16_i32 : i32 to vector<8x128xi32>
    %10 = arith.muli %8, %9 : vector<8x128xi32>
    %11 = arith.cmpi sge, %7, %10 : vector<8x128xi32>
    %c1_i32 = arith.constant 1 : i32
    %12 = vector.broadcast %c1_i32 : i32 to vector<8x128xi32>
    %13 = arith.addi %8, %12 : vector<8x128xi32>
    %c16_i32_6 = arith.constant 16 : i32
    %14 = vector.broadcast %c16_i32_6 : i32 to vector<8x128xi32>
    %15 = arith.muli %13, %14 : vector<8x128xi32>
    %16 = arith.cmpi slt, %7, %15 : vector<8x128xi32>
    %17 = arith.andi %11, %16 : vector<8x128xi1>
    %cst_7 = arith.constant 1.000000e+00 : f32
    %cst_8 = arith.constant 0.000000e+00 : f32
    %18 = vector.broadcast %cst_7 : f32 to vector<8x128xf32>
    %19 = vector.broadcast %cst_8 : f32 to vector<8x128xf32>
    %20 = arith.select %17, %18, %19 : vector<8x128xi1>, vector<8x128xf32>
    %cst_9 = arith.constant dense<0.000000e+00> : vector<128xf32>
    %21 = vector.multi_reduction <add>, %6, %cst_9 [0] : vector<4x128xf32> to vector<128xf32>
    %22 = vector.shape_cast %21 : vector<128xf32> to vector<1x128xf32>
    %23 = arith.mulf %6, %6 : vector<4x128xf32>
    %cst_10 = arith.constant dense<0.000000e+00> : vector<128xf32>
    %24 = vector.multi_reduction <add>, %23, %cst_10 [0] : vector<4x128xf32> to vector<128xf32>
    %25 = vector.shape_cast %24 : vector<128xf32> to vector<1x128xf32>
    %26 = vector.broadcast %22 : vector<1x128xf32> to vector<8x128xf32>
    %27 = arith.mulf %20, %26 : vector<8x128xf32>
    %cst_11 = arith.constant dense<0.000000e+00> : vector<8xf32>
    %28 = vector.multi_reduction <add>, %27, %cst_11 [1] : vector<8x128xf32> to vector<8xf32>
    %29 = vector.shape_cast %28 : vector<8xf32> to vector<8x1xf32>
    %30 = vector.broadcast %25 : vector<1x128xf32> to vector<8x128xf32>
    %31 = arith.mulf %20, %30 : vector<8x128xf32>
    %cst_12 = arith.constant dense<0.000000e+00> : vector<8xf32>
    %32 = vector.multi_reduction <add>, %31, %cst_12 [1] : vector<8x128xf32> to vector<8xf32>
    %33 = vector.shape_cast %32 : vector<8xf32> to vector<8x1xf32>
    %cst_13 = arith.constant 1.562500e-02 : f32
    %34 = vector.broadcast %cst_13 : f32 to vector<8x1xf32>
    %35 = arith.mulf %29, %34 : vector<8x1xf32>
    %cst_14 = arith.constant 1.562500e-02 : f32
    %36 = vector.broadcast %cst_14 : f32 to vector<8x1xf32>
    %37 = arith.mulf %33, %36 : vector<8x1xf32>
    %38 = arith.mulf %35, %35 : vector<8x1xf32>
    %39 = arith.subf %37, %38 : vector<8x1xf32>
    %cst_15 = arith.constant 0.000000e+00 : f32
    %40 = vector.broadcast %cst_15 : f32 to vector<8x1xf32>
    %41 = arith.maximumf %39, %40 : vector<8x1xf32>
    %cst_16 = arith.constant 9.99999974E-6 : f32
    %42 = vector.broadcast %cst_16 : f32 to vector<8x1xf32>
    %43 = arith.addf %41, %42 : vector<8x1xf32>
    %44 = math.rsqrt %43 : vector<8x1xf32>
    %45 = vector.broadcast %35 : vector<8x1xf32> to vector<8x128xf32>
    %46 = arith.mulf %45, %20 : vector<8x128xf32>
    %cst_17 = arith.constant dense<0.000000e+00> : vector<128xf32>
    %47 = vector.multi_reduction <add>, %46, %cst_17 [0] : vector<8x128xf32> to vector<128xf32>
    %48 = vector.shape_cast %47 : vector<128xf32> to vector<1x128xf32>
    %49 = vector.broadcast %44 : vector<8x1xf32> to vector<8x128xf32>
    %50 = arith.mulf %49, %20 : vector<8x128xf32>
    %cst_18 = arith.constant dense<0.000000e+00> : vector<128xf32>
    %51 = vector.multi_reduction <add>, %50, %cst_18 [0] : vector<8x128xf32> to vector<128xf32>
    %52 = vector.shape_cast %51 : vector<128xf32> to vector<1x128xf32>
    %53 = vector.broadcast %48 : vector<1x128xf32> to vector<4x128xf32>
    %54 = arith.subf %6, %53 : vector<4x128xf32>
    %55 = vector.broadcast %52 : vector<1x128xf32> to vector<4x128xf32>
    %56 = arith.mulf %54, %55 : vector<4x128xf32>
    %c0_19 = arith.constant 0 : index
    %c0_20 = arith.constant 0 : index
    %57 = vector.load %arg4[%c0_19, %c0_20] : memref<4x128xf32, #tpu.memory_space<vmem>>, vector<4x128xf32>
    %58 = arith.mulf %56, %57 : vector<4x128xf32>
    %c0_21 = arith.constant 0 : index
    %c0_22 = arith.constant 0 : index
    %59 = vector.load %arg5[%c0_21, %c0_22] : memref<1x4xf32, #tpu.memory_space<vmem>>, vector<1x4xf32>
    %cst_23 = arith.constant dense<0.000000e+00> : vector<1x128xf32>
    %60 = tpu.matmul %59, %58, %cst_23 {dimension_numbers = #tpu.dot_dimension_numbers<[1], [0], [0], [1], [0, 0, 1, 1], [], []>} : vector<1x4xf32>, vector<4x128xf32>, vector<1x128xf32> -> vector<1x128xf32>
    %c0_24 = arith.constant 0 : index
    %c0_25 = arith.constant 0 : index
    %61 = vector.load %arg6[%c0_24, %c0_25] : memref<1x128xf32, #tpu.memory_space<vmem>>, vector<1x128xf32>
    %62 = arith.addf %60, %61 : vector<1x128xf32>
    %c0_26 = arith.constant 0 : index
    %c0_27 = arith.constant 0 : index
    %c0_28 = arith.constant 0 : index
    %63 = vector.load %arg7[%c0_26, %c0_27, %c0_28] : memref<1x1x128xf32, #tpu.memory_space<vmem>>, vector<1x1x128xf32>
    %64 = vector.shape_cast %63 : vector<1x1x128xf32> to vector<1x128xf32>
    %65 = vector.shape_cast %62 : vector<1x128xf32> to vector<1x1x128xf32>
    tpu.vector_store %arg7[%c0_26, %c0_27, %c0_28], %65 {strides = array<i32>} : memref<1x1x128xf32, #tpu.memory_space<vmem>>, vector<1x1x128xf32>,
    return
  }
  func.func @transform_0(%arg0: i32) -> (i32, i32, i32) {
    %c0_i32 = arith.constant 0 : i32
    %c0_i32_0 = arith.constant 0 : i32
    %c0_i32_1 = arith.constant 0 : i32
    return %arg0, %c0_i32, %c0_i32_0 : i32, i32, i32
  }
  func.func @transform_1(%arg0: i32) -> (i32, i32) {
    %c0_i32 = arith.constant 0 : i32
    %c0_i32_0 = arith.constant 0 : i32
    %c0_i32_1 = arith.constant 0 : i32
    return %c0_i32, %c0_i32_0 : i32, i32
  }
  func.func @transform_2(%arg0: i32) -> (i32, i32) {
    %c0_i32 = arith.constant 0 : i32
    %c0_i32_0 = arith.constant 0 : i32
    %c0_i32_1 = arith.constant 0 : i32
    return %c0_i32, %c0_i32_0 : i32, i32
  }
  func.func @transform_3(%arg0: i32) -> (i32, i32) {
    %c0_i32 = arith.constant 0 : i32
    %c0_i32_0 = arith.constant 0 : i32
    %c0_i32_1 = arith.constant 0 : i32
    return %c0_i32, %c0_i32_0 : i32, i32
  }
  func.func @transform_4(%arg0: i32) -> (i32, i32) {
    %c0_i32 = arith.constant 0 : i32
    %c0_i32_0 = arith.constant 0 : i32
    %c0_i32_1 = arith.constant 0 : i32
    return %c0_i32, %c0_i32_0 : i32, i32
  }
  func.func @transform_5(%arg0: i32) -> (i32, i32) {
    %c0_i32 = arith.constant 0 : i32
    %c0_i32_0 = arith.constant 0 : i32
    %c0_i32_1 = arith.constant 0 : i32
    return %c0_i32, %c0_i32_0 : i32, i32
  }
  func.func @transform_6(%arg0: i32) -> (i32, i32, i32) {
    %c0_i32 = arith.constant 0 : i32
    %c0_i32_0 = arith.constant 0 : i32
    %c0_i32_1 = arith.constant 0 : i32
    return %arg0, %c0_i32, %c0_i32_0 : i32, i32, i32
  }
}

</mosaic_0001>

<llo_original>
// kernel: tpu_custom_call.1
$region0: #{tpu_custom_call.1}
  #allocation0 [shape = 'u32[]', space=smem, size = 0x4, offset = 0x4, fixed_abs, tag = 'smem constant byte address 0x4 - core index']
  #allocation1 [shape = 'u32[144,128]{1,0:T(1,128)}', space=vmem, size = 0x12000, scoped, tag = 'internal scratch']
  %s0 = inlined_call_operand.hbm [shape: f32[1,32,128], index: 0, kind: input, shape index: {}]
  %s1 = inlined_call_operand.vmem [shape: f32[4,32], index: 1, kind: input, shape index: {}]
  %s2 = inlined_call_operand.vmem [shape: f32[4,1], index: 2, kind: input, shape index: {}]
  %s3 = inlined_call_operand.vmem [shape: f32[4,128], index: 3, kind: input, shape index: {}]
  %s4 = inlined_call_operand.vmem [shape: f32[1,4], index: 4, kind: input, shape index: {}]
  %s5 = inlined_call_operand.vmem [shape: f32[1,128], index: 5, kind: input, shape index: {}]
  %s6 = inlined_call_operand.hbm [shape: f32[1,1,128], index: 6, kind: output, shape index: {}]
  %s7 = sld [smem:[#allocation0]]
  $region38: #{tpu_custom_call.1} parent=0
    _
  %s9 = ssub.s32 1, %s7
  %s10 = scalar_select 0, %s9, %s7
  $region1: #{tpu_custom_call.1} parent=0
    #allocation2 [shape = 'u8[16384]{0}', space=vmem, size = 0x4000, scoped, tag = 'input window, operand 0, single buffered']
    #allocation3 [shape = 's32[1]{0}', space=sflag, size = 0x4, scoped, tag = 'scoped memory for tpu_custom_call.1']
    #allocation4 [shape = 's32[1]{0}', space=sflag, size = 0x4, scoped, tag = 'scoped memory for tpu_custom_call.1']
    #allocation5 [shape = 'u8[512]{0}', space=vmem, size = 0x400, scoped, tag = 'output window, operand 0, single buffered']
    %11 = vsyncpa [#allocation3], 0
    %12 = vsyncpa [#allocation4], 0
    // Predicated region
    $region2: #{tpu_custom_call.1} parent=1 // pred_check
      _
    $region3: #{tpu_custom_call.1} parent=1 // pred_check_branch
      %14 = sbr.rel (0) target = $region5
    $region4: #{tpu_custom_call.1} parent=1 // pred_region
      %s16 = ssub.s32 512, 512
      %17 = vsyncadd [#allocation3], %s16
      %s18 = sshll.u32 [#allocation2], 4
      %s19 = int_to_ptr.vmem [resolvable:$true] %s18
      %24 = dma.hbm_to_vmem [thread:$0]  %s0, 512, %s19, [#allocation3], 128, 128, 8
    $region5: #{tpu_custom_call.1} parent=1 // pred_fallthru
      _
    // Predicated region
    $region6: #{tpu_custom_call.1} parent=1 // pred_check
      _
    $region7: #{tpu_custom_call.1} parent=1 // pred_check_branch
      %26 = sbr.rel (0) target = $region9
    $region8: #{tpu_custom_call.1} parent=1 // pred_region
      _
    $region9: #{tpu_custom_call.1} parent=1 // pred_fallthru
      _
    // Predicated region
    $region10: #{tpu_custom_call.1} parent=1 // pred_check
      _
    $region11: #{tpu_custom_call.1} parent=1 // pred_check_branch
      %28 = sbr.rel (0) target = $region13
    $region12: #{tpu_custom_call.1} parent=1 // pred_region
      _
    $region13: #{tpu_custom_call.1} parent=1 // pred_fallthru
      _
    // Predicated region
    $region14: #{tpu_custom_call.1} parent=1 // pred_check
      _
    $region15: #{tpu_custom_call.1} parent=1 // pred_check_branch
      %30 = sbr.rel (0) target = $region17
    $region16: #{tpu_custom_call.1} parent=1 // pred_region
      _
    $region17: #{tpu_custom_call.1} parent=1 // pred_fallthru
      _
    // Predicated region
    $region18: #{tpu_custom_call.1} parent=1 // pred_check
      _
    $region19: #{tpu_custom_call.1} parent=1 // pred_check_branch
      %32 = sbr.rel (0) target = $region21
    $region20: #{tpu_custom_call.1} parent=1 // pred_region
      _
    $region21: #{tpu_custom_call.1} parent=1 // pred_fallthru
      _
    // Predicated region
    $region22: #{tpu_custom_call.1} parent=1 // pred_check
      _
    $region23: #{tpu_custom_call.1} parent=1 // pred_check_branch
      %34 = sbr.rel (0) target = $region25
    $region24: #{tpu_custom_call.1} parent=1 // pred_region
      _
    $region25: #{tpu_custom_call.1} parent=1 // pred_fallthru
      _
    // Predicated region
    $region26: #{tpu_custom_call.1} parent=1 // pred_check
      _
    $region27: #{tpu_custom_call.1} parent=1 // pred_check_branch
      %36 = sbr.rel (0) target = $region29
    $region28: #{tpu_custom_call.1} parent=1 // pred_region
      %37 = dma.done [#allocation3], 512
    $region29: #{tpu_custom_call.1} parent=1 // pred_fallthru
      _
    %v38 = vld [vmem:[#allocation2] sm:$0xff]
    %v39 = vld [vmem:[#allocation2 + $0x8] sm:$0xff]
    %v40 = vld [vmem:[#allocation2 + $0x10] sm:$0xff]
    %v41 = vld [vmem:[#allocation2 + $0x18] sm:$0xff]
    %v42 = vld [vmem:[%s1] sm:$0xf]
    %v43 = vld [vmem:[%s2] sm:$0xf]
    %45 = vset.pattern.permute.xlu0 0
    %46 = vperm.xlu0 %45, %v43
    %v47 = vpop.permute.xlu0 %46
    %vm49 = vcmask 261120
    %v51 = vsel %vm49, %v42, 0
    %53 = vmatprep.subr.mxu0 0.0
    %54 = vmatpush1.msra.mxu0 %v38
    %55 = vmatprep.subr.mxu0 0.0
    %56 = vmatpush1.msra.mxu0 %v39
    %57 = vmatprep.subr.mxu0 0.0
    %58 = vmatpush1.msra.mxu0 %v40
    %59 = vmatprep.subr.mxu0 0.0
    %60 = vmatpush1.msra.mxu0 %v41
    %61 = vmatprep.subr.mxu0 0.0
    %62 = vmatpush1.msra.mxu0 0.0
    %63 = vmatprep.subr.mxu0 0.0
    %64 = vmatpush1.msra.mxu0 0.0
    %65 = vmatprep.subr.mxu0 0.0
    %66 = vmatpush1.msra.mxu0 0.0
    %67 = vmatprep.subr.mxu0 0.0
    %68 = vmatpush1.msra.mxu0 0.0
    %69 = vmatprep.subr.mxu0 0.0
    %70 = vmatpush1.msra.mxu0 0.0
    %71 = vmatprep.subr.mxu0 0.0
    %72 = vmatpush1.msra.mxu0 0.0
    %73 = vmatprep.subr.mxu0 0.0
    %74 = vmatpush1.msra.mxu0 0.0
    %75 = vmatprep.subr.mxu0 0.0
    %76 = vmatpush1.msra.mxu0 0.0
    %77 = vmatprep.subr.mxu0 0.0
    %78 = vmatpush1.msra.mxu0 0.0
    %79 = vmatprep.subr.mxu0 0.0
    %80 = vmatpush1.msra.mxu0 0.0
    %81 = vmatprep.subr.mxu0 0.0
    %82 = vmatpush1.msra.mxu0 0.0
    %83 = vmatprep.subr.mxu0 0.0
    %84 = vmatpush1.msra.mxu0 0.0
    %85 = vmatprep.subr.mxu0 0.0
    %86 = vmatpush1.msra.mxu0 0.0
    %87 = vmatprep.subr.mxu0 0.0
    %88 = vmatpush1.msra.mxu0 0.0
    %89 = vmatprep.subr.mxu0 0.0
    %90 = vmatpush1.msra.mxu0 0.0
    %91 = vmatprep.subr.mxu0 0.0
    %92 = vmatpush1.msra.mxu0 0.0
    %93 = vmatprep.subr.mxu0 0.0
    %94 = vmatpush1.msra.mxu0 0.0
    %95 = vmatprep.subr.mxu0 0.0
    %96 = vmatpush1.msra.mxu0 0.0
    %97 = vmatprep.subr.mxu0 0.0
    %98 = vmatpush1.msra.mxu0 0.0
    %99 = vmatprep.subr.mxu0 0.0
    %100 = vmatpush1.msra.mxu0 0.0
    %101 = vmatprep.subr.mxu0 0.0
    %102 = vmatpush1.msra.mxu0 0.0
    %103 = vmatprep.subr.mxu0 0.0
    %104 = vmatpush1.msra.mxu0 0.0
    %105 = vmatprep.subr.mxu0 0.0
    %106 = vmatpush1.msra.mxu0 0.0
    %107 = vmatprep.subr.mxu0 0.0
    %108 = vmatpush1.msra.mxu0 0.0
    %109 = vmatprep.subr.mxu0 0.0
    %110 = vmatpush1.msra.mxu0 0.0
    %111 = vmatprep.subr.mxu0 0.0
    %112 = vmatpush1.msra.mxu0 0.0
    %113 = vmatprep.subr.mxu0 0.0
    %114 = vmatpush1.msra.mxu0 0.0
    %115 = vmatprep.subr.mxu0 0.0
    %116 = vmatpush1.msra.mxu0 0.0
    %117 = vmatprep.mubr.f32.mxu0 0.0
    %118 = vmatmul.mubr.f32.gmra.mrb[0].mxu0 %v51
    %v119 = vpop.f32.mrb[0].mxu0
    %v120 = vadd.f32 %v47, %v119
    %v121 = vpop.f32.mrb[0].mxu0
    %122 = vdwg.mxu0
    %v123 = vlaneseq
    %v124 = vand.u32 %v123, 127
    %v125 = vlaneseq
    %v126 = vshrl.u32 %v125, 7
    %v127 = vmul.u32 %v126, 16
    %vm128 = vcmp.ge.s32.totalorder %v124, %v127
    %v129 = vadd.s32 %v126, 1
    %v130 = vmul.u32 %v129, 16
    %vm131 = vcmp.lt.s32.totalorder %v124, %v130
    %vm132 = vmand %vm128, %vm131
    %v133 = vsel %vm132, 1.0, 0.0
    %vm134 = vcmask 1043456
    %v135 = vsel %vm134, %v120, 0.0
    %v136 = vrot.slane %v135, 4
    %v137 = vadd.f32 %v135, %v136
    %v138 = vrot.slane %v137, 2
    %v139 = vadd.f32 %v137, %v138
    %v140 = vrot.slane %v139, 1
    %v141 = vadd.f32 %v139, %v140
    %v142 = vmul.f32 %v120, %v120
    %v143 = vsel %vm134, %v142, 0.0
    %v144 = vrot.slane %v143, 4
    %v145 = vadd.f32 %v143, %v144
    %v146 = vrot.slane %v145, 2
    %v147 = vadd.f32 %v145, %v146
    %v148 = vrot.slane %v147, 1
    %v149 = vadd.f32 %v147, %v148
    %v150 = vmul.f32 %v133, %v141
    %151 = vadd.xlane.f32.xlu0 %v150
    %v152 = vpop.xlane.xlu0 %151
    %v153 = vmul.f32 %v133, %v149
    %154 = vadd.xlane.f32.xlu0 %v153
    %v155 = vpop.xlane.xlu0 %154
    %v156 = vmul.f32 %v152, 0.015625
    %v157 = vmul.f32 %v155, 0.015625
    %v158 = vmul.f32 %v156, %v156
    %v159 = vsub.f32 %v157, %v158
    %v160 = vmax.f32 %v159, 0.0
    %v161 = vadd.f32 %v160, 1e-05
    %v162 = vrsqrt.pop %v161
    %v163 = vmul.f32 %v156, %v133
    %v164 = vrot.slane %v163, 4
    %v165 = vadd.f32 %v163, %v164
    %v166 = vrot.slane %v165, 2
    %v167 = vadd.f32 %v165, %v166
    %v168 = vrot.slane %v167, 1
    %v169 = vadd.f32 %v167, %v168
    %v170 = vmul.f32 %v162, %v133
    %v171 = vrot.slane %v170, 4
    %v172 = vadd.f32 %v170, %v171
    %v173 = vrot.slane %v172, 2
    %v174 = vadd.f32 %v172, %v173
    %v175 = vrot.slane %v174, 1
    %v176 = vadd.f32 %v174, %v175
    %v177 = vsub.f32 %v120, %v169
    %v178 = vmul.f32 %v177, %v176
    %v179 = vld [vmem:[%s3] sm:$0xf]
    %v180 = vmul.f32 %v178, %v179
    %v181 = vld [vmem:[%s4] sm:$0x1]
    %v182 = vld [vmem:[%s5] sm:$0x1]
    %vm183 = vcmask 31744
    %v185 = vsel %vm183, %v181, 0
    %v188 = vsel %vm134, %v180, 0
    %190 = vmatprep.subr.mxu0 0.0
    %191 = vmatpush1.msra.mxu0 %v188
    %192 = vmatprep.subr.mxu0 0.0
    %193 = vmatpush1.msra.mxu0 0.0
    %194 = vmatprep.subr.mxu0 0.0
    %195 = vmatpush1.msra.mxu0 0.0
    %196 = vmatprep.subr.mxu0 0.0
    %197 = vmatpush1.msra.mxu0 0.0
    %198 = vmatprep.subr.mxu0 0.0
    %199 = vmatpush1.msra.mxu0 0.0
    %200 = vmatprep.subr.mxu0 0.0
    %201 = vmatpush1.msra.mxu0 0.0
    %202 = vmatprep.subr.mxu0 0.0
    %203 = vmatpush1.msra.mxu0 0.0
    %204 = vmatprep.subr.mxu0 0.0
    %205 = vmatpush1.msra.mxu0 0.0
    %206 = vmatprep.subr.mxu0 0.0
    %207 = vmatpush1.msra.mxu0 0.0
    %208 = vmatprep.subr.mxu0 0.0
    %209 = vmatpush1.msra.mxu0 0.0
    %210 = vmatprep.subr.mxu0 0.0
    %211 = vmatpush1.msra.mxu0 0.0
    %212 = vmatprep.subr.mxu0 0.0
    %213 = vmatpush1.msra.mxu0 0.0
    %214 = vmatprep.subr.mxu0 0.0
    %215 = vmatpush1.msra.mxu0 0.0
    %216 = vmatprep.subr.mxu0 0.0
    %217 = vmatpush1.msra.mxu0 0.0
    %218 = vmatprep.subr.mxu0 0.0
    %219 = vmatpush1.msra.mxu0 0.0
    %220 = vmatprep.subr.mxu0 0.0
    %221 = vmatpush1.msra.mxu0 0.0
    %222 = vmatprep.subr.mxu0 0.0
    %223 = vmatpush1.msra.mxu0 0.0
    %224 = vmatprep.subr.mxu0 0.0
    %225 = vmatpush1.msra.mxu0 0.0
    %226 = vmatprep.subr.mxu0 0.0
    %227 = vmatpush1.msra.mxu0 0.0
    %228 = vmatprep.subr.mxu0 0.0
    %229 = vmatpush1.msra.mxu0 0.0
    %230 = vmatprep.subr.mxu0 0.0
    %231 = vmatpush1.msra.mxu0 0.0
    %232 = vmatprep.subr.mxu0 0.0
    %233 = vmatpush1.msra.mxu0 0.0
    %234 = vmatprep.subr.mxu0 0.0
    %235 = vmatpush1.msra.mxu0 0.0
    %236 = vmatprep.subr.mxu0 0.0
    %237 = vmatpush1.msra.mxu0 0.0
    %238 = vmatprep.subr.mxu0 0.0
    %239 = vmatpush1.msra.mxu0 0.0
    %240 = vmatprep.subr.mxu0 0.0
    %241 = vmatpush1.msra.mxu0 0.0
    %242 = vmatprep.subr.mxu0 0.0
    %243 = vmatpush1.msra.mxu0 0.0
    %244 = vmatprep.subr.mxu0 0.0
    %245 = vmatpush1.msra.mxu0 0.0
    %246 = vmatprep.subr.mxu0 0.0
    %247 = vmatpush1.msra.mxu0 0.0
    %248 = vmatprep.subr.mxu0 0.0
    %249 = vmatpush1.msra.mxu0 0.0
    %250 = vmatprep.subr.mxu0 0.0
    %251 = vmatpush1.msra.mxu0 0.0
    %252 = vmatprep.subr.mxu0 0.0
    %253 = vmatpush1.msra.mxu0 0.0
    %254 = vmatprep.mubr.f32.mxu0 0.0
    %255 = vmatmul.mubr.f32.gmra.mrb[0].mxu0 %v185
    %v256 = vpop.f32.mrb[0].mxu0
    %v257 = vadd.f32 %v182, %v256
    %v258 = vpop.f32.mrb[0].mxu0
    %259 = vdwg.mxu0
    %260 = vst [vmem:[#allocation5] sm:$0x1] %v257
    // Predicated region
    $region30: #{tpu_custom_call.1} parent=1 // pred_check
      _
    $region31: #{tpu_custom_call.1} parent=1 // pred_check_branch
      %262 = sbr.rel (0) target = $region33
    $region32: #{tpu_custom_call.1} parent=1 // pred_region
      %s264 = ssub.s32 16, 16
      %265 = vsyncadd [#allocation4], %s264
      %s267 = sshll.u32 [#allocation5], 4
      %s268 = int_to_ptr.vmem [resolvable:$true] %s267
      %270 = dma.vmem_to_hbm [thread:$0]  %s268, 16, %s6, [#allocation4]
    $region33: #{tpu_custom_call.1} parent=1 // pred_fallthru
      _
    // Predicated region
    $region34: #{tpu_custom_call.1} parent=1 // pred_check
      _
    $region35: #{tpu_custom_call.1} parent=1 // pred_check_branch
      %272 = sbr.rel (0) target = $region37
    $region36: #{tpu_custom_call.1} parent=1 // pred_region
      %273 = dma.done [#allocation4], 16
    $region37: #{tpu_custom_call.1} parent=1 // pred_fallthru
      _
    %274 = vsyncpa [#allocation3], 1
    %275 = vsyncpa [#allocation4], 1

</llo_original>
